<compile_context>
chip_gen: v7x
topology: tpu7x:2x2x1
jax: 0.10.0
libtpu: 0.0.40
codegen_flags: <defaults>
</compile_context>

<pallas_src>
import functools

import jax
import jax.numpy as jnp
from jax import lax
from jax.experimental import pallas as pl
from jax.experimental.pallas import tpu as pltpu

EPS = 1e-10


def _stable_sigmoid(x):
    # numerically stable sigmoid; single divide (EUP exp + one VPU divide)
    z = jnp.exp(-jnp.abs(x))
    inv = 1.0 / (1.0 + z)
    return jnp.where(x >= 0, inv, z * inv)


def mixture_kernel(pi_ref, mu_ref, s_ref, out_ref, log_ref, *,
                   d, d_tile, chunk_rows):
    # pi_ref / mu_ref / s_ref: (K, 1) f32 in VMEM (tiny, same block every step)
    # out_ref: (TB, TD) f32 tile of the (B, d_pad) output
    # log_ref: (8, TD) f32 persistent scratch caching log_probs for this d-tile
    j = pl.program_id(0)   # d-tile index (outer, slow)
    i = pl.program_id(1)   # batch-tile index (inner, fast)

    # ---- compute the mixture log-probs ONCE per d-tile (first batch step) ----
    @pl.when(i == 0)
    def _compute():
        mu = mu_ref[...]                              # (K, 1)
        s2 = s_ref[...] * s_ref[...]                  # (K, 1)
        inv_s2 = 1.0 / s2                             # reciprocal on tiny tensor

        col0 = j * d_tile
        idx_i = col0 + lax.broadcasted_iota(jnp.int32, (1, d_tile), 1)
        idx_f = idx_i.astype(jnp.float32)
        pos_edge = jnp.where(idx_i == d - 1, jnp.float32(1e7), idx_f + 0.5)
        neg_edge = jnp.where(idx_i == 0, jnp.float32(-1e7), idx_f - 0.5)

        pos = _stable_sigmoid((pos_edge - mu) * inv_s2)   # (K, TD)
        neg = _stable_sigmoid((neg_edge - mu) * inv_s2)   # (K, TD)
        res = pos - neg + EPS                             # (K, TD)

        # softmax over the K mixture logits (tiny (K, 1) tensor)
        pi_logits = pi_ref[...]
        pi_max = jnp.max(pi_logits, axis=0, keepdims=True)
        pi_exp = jnp.exp(pi_logits - pi_max)
        pi_w = pi_exp / jnp.sum(pi_exp, axis=0, keepdims=True)   # (K, 1)

        probs = jnp.sum(res * pi_w, axis=0, keepdims=True)       # (1, TD)
        log_probs = jnp.log(probs)                                # (1, TD)
        log_ref[...] = jnp.broadcast_to(log_probs, log_ref.shape)

    # ---- pure broadcast + chunked store (every grid step) -------------------
    TB, TD = out_ref.shape
    CH = chunk_rows
    # broadcast ONCE per grid step to a small chunk (kept in ~CH/8 vregs);
    # do NOT re-broadcast inside the loop (broadcast_in_dim is not CSE'd).
    chunk = jnp.broadcast_to(log_ref[0:1, :], (CH, TD))

    n_full = TB // CH
    rem = TB - n_full * CH

    if n_full > 0:
        def store_body(r, carry):
            start = pl.multiple_of(r * CH, CH)
            out_ref[pl.ds(start, CH), :] = chunk
            return carry
        lax.fori_loop(0, n_full, store_body, 0, unroll=True)
    if rem > 0:
        out_ref[pl.ds(n_full * CH, rem), :] = chunk[:rem, :]


def mixture_of_logistics_forward(x, pi, mu, s, d, *,
                                 batch_tile=4096, max_d_tile=2048):
    """x is only used for its leading (batch) dimension, as in the torch module."""
    batch = x.shape[0]
    K = mu.shape[0]

    # lane-dense output width, tiled over d for large vocabularies
    d_pad0 = 128 * pl.cdiv(d, 128)
    TD = min(d_pad0, max_d_tile)
    d_pad = TD * pl.cdiv(d_pad0, TD)          # ensure d_pad % TD == 0
    num_d_tiles = d_pad // TD

    # batch tile: big enough to amortize per-step overhead (>~1 MiB stores),
    # capped so the double-buffered output tile stays under ~8 MiB of VMEM
    # (fits v7x's 32 MiB scoped / 64 MiB physical with plenty of headroom).
    max_tb_for_vmem = max(8, ((8 * 1024 * 1024) // (2 * TD * 4)) // 8 * 8)
    TB = min(batch, batch_tile, max_tb_for_vmem)
    num_batch_tiles = pl.cdiv(batch, TB)

    chunk_rows = min(64, TB)

    cost = pl.CostEstimate(
        flops=20 * K * d_pad,
        transcendentals=2 * K * d_pad + K,
        bytes_accessed=batch * d_pad * 4 + 3 * K * 4,
    )

    param_spec = pl.BlockSpec((K, 1), lambda j, i: (0, 0))

    out = pl.pallas_call(
        functools.partial(mixture_kernel, d=d, d_tile=TD, chunk_rows=chunk_rows),
        out_shape=jax.ShapeDtypeStruct((batch, d_pad), jnp.float32),
        grid=(num_d_tiles, num_batch_tiles),
        in_specs=[param_spec, param_spec, param_spec],
        out_specs=pl.BlockSpec((TB, TD), lambda j, i: (i, j)),
        scratch_shapes=[pltpu.VMEM((8, TD), jnp.float32)],
        compiler_params=pltpu.CompilerParams(
            dimension_semantics=("parallel", "arbitrary")),
        cost_estimate=cost,
    )(pi.reshape(K, 1).astype(jnp.float32),
      mu.astype(jnp.float32),
      s.astype(jnp.float32))

    if d_pad != d:
        out = out[:, :d]
    return out


def reference_forward(x, pi, mu, s, d):
    # pure-JAX reference mirroring the PyTorch code path
    s2 = s.astype(jnp.float32) ** 2
    mu_f = mu.astype(jnp.float32)
    idx = jnp.arange(d, dtype=jnp.float32)
    pos_edge = (idx + 0.5).at[d - 1].set(1e7)
    neg_edge = (idx - 0.5).at[0].set(-1e7)
    pos = jax.nn.sigmoid((pos_edge[None, :] - mu_f) / s2)
    neg = jax.nn.sigmoid((neg_edge[None, :] - mu_f) / s2)
    res = pos - neg + EPS
    pi_w = jax.nn.softmax(pi.astype(jnp.float32)).reshape(-1, 1)
    probs = jnp.sum(res * pi_w, axis=0)
    log_probs = jnp.log(probs)
    return jnp.broadcast_to(log_probs[None, :], (x.shape[0], d))


if __name__ == "__main__":
    # small, deterministic setup consistent with the module:
    #   d = 128 categorical values, mixture_size K = 4, batch = 8
    d = 128
    mixture_size = 4
    batch = 8

    key = jax.random.PRNGKey(0)
    k_mu, k_x = jax.random.split(key)

    # deterministic parameter init matching torch __init__:
    #   pi = zeros(K), s = ones(K,1), mu ~ Uniform(0, d) of shape (K,1)
    pi = jnp.zeros((mixture_size,), dtype=jnp.float32)
    s = jnp.ones((mixture_size, 1), dtype=jnp.float32)
    mu = jax.random.uniform(k_mu, (mixture_size, 1), dtype=jnp.float32,
                            minval=0.0, maxval=float(d))

    # input: a batch of integer samples; only its leading dim matters
    x = jax.random.randint(k_x, (batch,), 0, d)

    out = mixture_of_logistics_forward(x, pi, mu, s, d)
    out = jax.block_until_ready(out)

    ref = reference_forward(x, pi, mu, s, d)
    assert out.shape == (batch, d)
    assert jnp.allclose(out, ref, atol=1e-5, rtol=1e-5), "mismatch vs reference"

    print("KERNEL_OK")
</pallas_src>

<mosaic_0001>
module attributes {stable_mosaic.version = 11 : i64} {
  func.func @mixture_kernel(%arg0: i32, %arg1: i32, %arg2: memref<4x1xf32, #tpu.memory_space<vmem>>, %arg3: memref<4x1xf32, #tpu.memory_space<vmem>>, %arg4: memref<4x1xf32, #tpu.memory_space<vmem>>, %arg5: memref<8x128xf32, #tpu.memory_space<vmem>>, %arg6: memref<8x128xf32, #tpu.memory_space<vmem>>) attributes {dimension_semantics = [#tpu.dimension_semantics<parallel>, #tpu.dimension_semantics<arbitrary>], iteration_bounds = array<i64: 1, 1>, scalar_prefetch = 0 : i64, scratch_operands = 1 : i64, tpu.core_type = #tpu.core_type<tc>, window_params = [{pipeline_mode = #tpu.pipeline_mode<synchronous>, transform_indices = @transform_0, window_bounds = array<i64: 4, 1>}, {pipeline_mode = #tpu.pipeline_mode<synchronous>, transform_indices = @transform_1, window_bounds = array<i64: 4, 1>}, {pipeline_mode = #tpu.pipeline_mode<synchronous>, transform_indices = @transform_2, window_bounds = array<i64: 4, 1>}, {transform_indices = @transform_3, window_bounds = array<i64: 8, 128>}]} {
    %c0_i32 = arith.constant 0 : i32
    %0 = arith.cmpi eq, %arg1, %c0_i32 : i32
    %1 = arith.extui %0 : i1 to i32
    %c0_i32_0 = arith.constant 0 : i32
    %2 = arith.cmpi ne, %1, %c0_i32_0 : i32
    scf.if %2 {
      %c0_4 = arith.constant 0 : index
      %c0_5 = arith.constant 0 : index
      %10 = vector.load %arg3[%c0_4, %c0_5] : memref<4x1xf32, #tpu.memory_space<vmem>>, vector<4x1xf32>
      %c0_6 = arith.constant 0 : index
      %c0_7 = arith.constant 0 : index
      %11 = vector.load %arg4[%c0_6, %c0_7] : memref<4x1xf32, #tpu.memory_space<vmem>>, vector<4x1xf32>
      %c0_8 = arith.constant 0 : index
      %c0_9 = arith.constant 0 : index
      %12 = vector.load %arg4[%c0_8, %c0_9] : memref<4x1xf32, #tpu.memory_space<vmem>>, vector<4x1xf32>
      %13 = arith.mulf %11, %12 : vector<4x1xf32>
      %cst = arith.constant 1.000000e+00 : f32
      %14 = vector.broadcast %cst : f32 to vector<4x1xf32>
      %15 = arith.divf %14, %13 : vector<4x1xf32>
      %c128_i32 = arith.constant 128 : i32
      %16 = arith.muli %arg0, %c128_i32 : i32
      %17 = tpu.iota {dimensions = array<i32: 1>} : vector<1x128xi32>
      %18 = vector.broadcast %16 : i32 to vector<1x128xi32>
      %19 = arith.addi %18, %17 : vector<1x128xi32>
      %20 = arith.sitofp %19 : vector<1x128xi32> to vector<1x128xf32>
      %c127_i32 = arith.constant 127 : i32
      %21 = vector.broadcast %c127_i32 : i32 to vector<1x128xi32>
      %22 = arith.cmpi eq, %19, %21 : vector<1x128xi32>
      %cst_10 = arith.constant 5.000000e-01 : f32
      %23 = vector.broadcast %cst_10 : f32 to vector<1x128xf32>
      %24 = arith.addf %20, %23 : vector<1x128xf32>
      %cst_11 = arith.constant 1.000000e+07 : f32
      %25 = vector.broadcast %cst_11 : f32 to vector<1x128xf32>
      %26 = arith.select %22, %25, %24 : vector<1x128xi1>, vector<1x128xf32>
      %c0_i32_12 = arith.constant 0 : i32
      %27 = vector.broadcast %c0_i32_12 : i32 to vector<1x128xi32>
      %28 = arith.cmpi eq, %19, %27 : vector<1x128xi32>
      %cst_13 = arith.constant 5.000000e-01 : f32
      %29 = vector.broadcast %cst_13 : f32 to vector<1x128xf32>
      %30 = arith.subf %20, %29 : vector<1x128xf32>
      %cst_14 = arith.constant -1.000000e+07 : f32
      %31 = vector.broadcast %cst_14 : f32 to vector<1x128xf32>
      %32 = arith.select %28, %31, %30 : vector<1x128xi1>, vector<1x128xf32>
      %33 = vector.broadcast %26 : vector<1x128xf32> to vector<4x128xf32>
      %34 = vector.broadcast %10 : vector<4x1xf32> to vector<4x128xf32>
      %35 = arith.subf %33, %34 : vector<4x128xf32>
      %36 = vector.broadcast %15 : vector<4x1xf32> to vector<4x128xf32>
      %37 = arith.mulf %35, %36 : vector<4x128xf32>
      %38 = math.absf %37 : vector<4x128xf32>
      %cst_15 = arith.constant 0.000000e+00 : f32
      %39 = vector.broadcast %cst_15 : f32 to vector<4x128xf32>
      %40 = arith.subf %39, %38 : vector<4x128xf32>
      %41 = math.exp %40 : vector<4x128xf32>
      %cst_16 = arith.constant 1.000000e+00 : f32
      %42 = vector.broadcast %cst_16 : f32 to vector<4x128xf32>
      %43 = arith.addf %42, %41 : vector<4x128xf32>
      %cst_17 = arith.constant 1.000000e+00 : f32
      %44 = vector.broadcast %cst_17 : f32 to vector<4x128xf32>
      %45 = arith.divf %44, %43 : vector<4x128xf32>
      %cst_18 = arith.constant 0.000000e+00 : f32
      %46 = vector.broadcast %cst_18 : f32 to vector<4x128xf32>
      %47 = arith.cmpf oge, %37, %46 : vector<4x128xf32>
      %48 = arith.mulf %41, %45 : vector<4x128xf32>
      %49 = arith.select %47, %45, %48 : vector<4x128xi1>, vector<4x128xf32>
      %50 = vector.broadcast %32 : vector<1x128xf32> to vector<4x128xf32>
      %51 = vector.broadcast %10 : vector<4x1xf32> to vector<4x128xf32>
      %52 = arith.subf %50, %51 : vector<4x128xf32>
      %53 = vector.broadcast %15 : vector<4x1xf32> to vector<4x128xf32>
      %54 = arith.mulf %52, %53 : vector<4x128xf32>
      %55 = math.absf %54 : vector<4x128xf32>
      %cst_19 = arith.constant 0.000000e+00 : f32
      %56 = vector.broadcast %cst_19 : f32 to vector<4x128xf32>
      %57 = arith.subf %56, %55 : vector<4x128xf32>
      %58 = math.exp %57 : vector<4x128xf32>
      %cst_20 = arith.constant 1.000000e+00 : f32
      %59 = vector.broadcast %cst_20 : f32 to vector<4x128xf32>
      %60 = arith.addf %59, %58 : vector<4x128xf32>
      %cst_21 = arith.constant 1.000000e+00 : f32
      %61 = vector.broadcast %cst_21 : f32 to vector<4x128xf32>
      %62 = arith.divf %61, %60 : vector<4x128xf32>
      %cst_22 = arith.constant 0.000000e+00 : f32
      %63 = vector.broadcast %cst_22 : f32 to vector<4x128xf32>
      %64 = arith.cmpf oge, %54, %63 : vector<4x128xf32>
      %65 = arith.mulf %58, %62 : vector<4x128xf32>
      %66 = arith.select %64, %62, %65 : vector<4x128xi1>, vector<4x128xf32>
      %67 = arith.subf %49, %66 : vector<4x128xf32>
      %cst_23 = arith.constant 1.000000e-10 : f32
      %68 = vector.broadcast %cst_23 : f32 to vector<4x128xf32>
      %69 = arith.addf %67, %68 : vector<4x128xf32>
      %c0_24 = arith.constant 0 : index
      %c0_25 = arith.constant 0 : index
      %70 = vector.load %arg2[%c0_24, %c0_25] : memref<4x1xf32, #tpu.memory_space<vmem>>, vector<4x1xf32>
      %cst_26 = arith.constant dense<0xFF800000> : vector<1xf32>
      %71 = vector.multi_reduction <maximumf>, %70, %cst_26 [0] : vector<4x1xf32> to vector<1xf32>
      %72 = vector.shape_cast %71 : vector<1xf32> to vector<1x1xf32>
      %73 = vector.broadcast %72 : vector<1x1xf32> to vector<4x1xf32>
      %74 = arith.subf %70, %73 : vector<4x1xf32>
      %75 = math.exp %74 : vector<4x1xf32>
      %cst_27 = arith.constant dense<0.000000e+00> : vector<1xf32>
      %76 = vector.multi_reduction <add>, %75, %cst_27 [0] : vector<4x1xf32> to vector<1xf32>
      %77 = vector.shape_cast %76 : vector<1xf32> to vector<1x1xf32>
      %78 = vector.broadcast %77 : vector<1x1xf32> to vector<4x1xf32>
      %79 = arith.divf %75, %78 : vector<4x1xf32>
      %80 = vector.broadcast %79 : vector<4x1xf32> to vector<4x128xf32>
      %81 = arith.mulf %69, %80 : vector<4x128xf32>
      %cst_28 = arith.constant dense<0.000000e+00> : vector<128xf32>
      %82 = vector.multi_reduction <add>, %81, %cst_28 [0] : vector<4x128xf32> to vector<128xf32>
      %83 = vector.shape_cast %82 : vector<128xf32> to vector<1x128xf32>
      %84 = math.log %83 : vector<1x128xf32>
      %85 = vector.shape_cast %84 : vector<1x128xf32> to vector<1x128xf32>
      %86 = vector.broadcast %85 : vector<1x128xf32> to vector<8x128xf32>
      %c0_29 = arith.constant 0 : index
      %c0_30 = arith.constant 0 : index
      %87 = vector.load %arg6[%c0_29, %c0_30] : memref<8x128xf32, #tpu.memory_space<vmem>>, vector<8x128xf32>
      tpu.vector_store %arg6[%c0_29, %c0_30], %86 {strides = array<i32>} : memref<8x128xf32, #tpu.memory_space<vmem>>, vector<8x128xf32>,
    } else {
    }
    %c0 = arith.constant 0 : index
    %c0_1 = arith.constant 0 : index
    %3 = vector.load %arg6[%c0, %c0_1] : memref<8x128xf32, #tpu.memory_space<vmem>>, vector<1x128xf32>
    %4 = vector.shape_cast %3 : vector<1x128xf32> to vector<1x128xf32>
    %5 = vector.broadcast %4 : vector<1x128xf32> to vector<8x128xf32>
    %c0_i32_2 = arith.constant 0 : i32
    %c8_i32 = arith.constant 8 : i32
    %6 = arith.muli %c0_i32_2, %c8_i32 : i32
    %7 = tpu.assume_multiple %6, 8 : i32
    %8 = arith.index_cast %7 : i32 to index
    %c0_3 = arith.constant 0 : index
    %9 = vector.load %arg5[%8, %c0_3] : memref<8x128xf32, #tpu.memory_space<vmem>>, vector<8x128xf32>
    tpu.vector_store %arg5[%8, %c0_3], %5 {strides = array<i32>} : memref<8x128xf32, #tpu.memory_space<vmem>>, vector<8x128xf32>,
    %c1_i32 = arith.constant 1 : i32
    return
  }
  func.func @transform_0(%arg0: i32, %arg1: i32) -> (i32, i32) {
    %c0_i32 = arith.constant 0 : i32
    %c0_i32_0 = arith.constant 0 : i32
    %c0_i32_1 = arith.constant 0 : i32
    return %c0_i32, %c0_i32_0 : i32, i32
  }
  func.func @transform_1(%arg0: i32, %arg1: i32) -> (i32, i32) {
    %c0_i32 = arith.constant 0 : i32
    %c0_i32_0 = arith.constant 0 : i32
    %c0_i32_1 = arith.constant 0 : i32
    return %c0_i32, %c0_i32_0 : i32, i32
  }
  func.func @transform_2(%arg0: i32, %arg1: i32) -> (i32, i32) {
    %c0_i32 = arith.constant 0 : i32
    %c0_i32_0 = arith.constant 0 : i32
    %c0_i32_1 = arith.constant 0 : i32
    return %c0_i32, %c0_i32_0 : i32, i32
  }
  func.func @transform_3(%arg0: i32, %arg1: i32) -> (i32, i32) {
    %c0_i32 = arith.constant 0 : i32
    return %arg1, %arg0 : i32, i32
  }
}

</mosaic_0001>

<llo_original>
// kernel: tpu_custom_call.1
$region0: #{tpu_custom_call.1}
  #allocation0 [shape = 'u32[]', space=smem, size = 0x4, offset = 0x4, fixed_abs, tag = 'smem constant byte address 0x4 - core index']
  #allocation1 [shape = 'u32[144,128]{1,0:T(1,128)}', space=vmem, size = 0x12000, scoped, tag = 'internal scratch']
  #allocation2 [shape = 'f32[8,128]{1,0:T(8,128)}', space=vmem, size = 0x1000, scoped, tag = 'scratch operand']
  %s0 = inlined_call_operand.vmem [shape: f32[4,1], index: 0, kind: input, shape index: {}]
  %s1 = inlined_call_operand.vmem [shape: f32[4,1], index: 1, kind: input, shape index: {}]
  %s2 = inlined_call_operand.vmem [shape: f32[4,1], index: 2, kind: input, shape index: {}]
  %s3 = inlined_call_operand.hbm [shape: f32[8,128], index: 3, kind: output, shape index: {}]
  %s4 = sld [smem:[#allocation0]]
  $region26: #{tpu_custom_call.1} parent=0
    _
  %s6 = ssub.s32 1, %s4
  %s7 = scalar_select 0, %s6, %s4
  $region1: #{tpu_custom_call.1} parent=0
    #allocation3 [shape = 'u8[4096]{0}', space=vmem, size = 0x1000, scoped, tag = 'output window, operand 0, single buffered']
    #allocation4 [shape = 's32[1]{0}', space=sflag, size = 0x4, scoped, tag = 'scoped memory for tpu_custom_call.1']
    %8 = vsyncpa [#allocation4], 0
    // Predicated region
    $region2: #{tpu_custom_call.1} parent=1 // pred_check
      _
    $region3: #{tpu_custom_call.1} parent=1 // pred_check_branch
      %10 = sbr.rel (0) target = $region5
    $region4: #{tpu_custom_call.1} parent=1 // pred_region
      _
    $region5: #{tpu_custom_call.1} parent=1 // pred_fallthru
      _
    // Predicated region
    $region6: #{tpu_custom_call.1} parent=1 // pred_check
      _
    $region7: #{tpu_custom_call.1} parent=1 // pred_check_branch
      %12 = sbr.rel (0) target = $region9
    $region8: #{tpu_custom_call.1} parent=1 // pred_region
      _
    $region9: #{tpu_custom_call.1} parent=1 // pred_fallthru
      _
    // Predicated region
    $region10: #{tpu_custom_call.1} parent=1 // pred_check
      _
    $region11: #{tpu_custom_call.1} parent=1 // pred_check_branch
      %14 = sbr.rel (0) target = $region13
    $region12: #{tpu_custom_call.1} parent=1 // pred_region
      _
    $region13: #{tpu_custom_call.1} parent=1 // pred_fallthru
      _
    %p15 = scmp.eq.s32.totalorder 0, 0
    // Predicated region
    $region14: #{tpu_custom_call.1} parent=1 // pred_check
      %p16 = pneg %p15
    $region15: #{tpu_custom_call.1} parent=1 // pred_check_branch
      %18 = sbr.rel (%p16) target = $region17
    $region16: #{tpu_custom_call.1} parent=1 // pred_region
      %v19 = vld [vmem:[%s1] sm:$0xf]
      %v20 = vld [vmem:[%s2] sm:$0xf]
      %v21 = vmul.f32 %v20, %v20
      %v22 = vrcp.pop %v21
      %v23 = vmul.f32 1.0, %v22
      %s24 = smul.u32 0, 128
      %v25 = vlaneseq
      %v26 = vand.u32 %v25, 127
      %v27 = vstv %s24
      %v28 = vadd.s32 %v27, %v26
      %v29 = vcvt.s32.f32 %v28
      %vm30 = vcmp.eq.s32.totalorder %v28, 127
      %v31 = vadd.f32 %v29, 0.5
      %v32 = vsel %vm30, 10000000.0, %v31
      %vm33 = vcmp.eq.s32.totalorder %v28, 0
      %v34 = vsub.f32 %v29, 0.5
      %v35 = vsel %vm33, -10000000.0, %v34
      %37 = vset.pattern.permute.xlu0 0
      %38 = vperm.xlu0 %37, %v19
      %v39 = vpop.permute.xlu0 %38
      %v41 = vsub.f32 %v32, %v39
      %43 = vset.pattern.permute.xlu0 0
      %44 = vperm.xlu0 %43, %v23
      %v45 = vpop.permute.xlu0 %44
      %v47 = vmul.f32 %v41, %v45
      %v48 = vand.u32 2147483647, %v47
      %v49 = vsub.f32 0.0, %v48
      %v50 = vmul.f32 %v49, 1.442695
      %v51 = vpow.pop %v50
      %v52 = vadd.f32 %v51, 1.0
      %v53 = vrcp.pop %v52
      %v54 = vmul.f32 1.0, %v53
      %vm55 = vcmp.ge.f32.partialorder %v47, 0.0
      %v56 = vmul.f32 %v51, %v54
      %v57 = vsel %vm55, %v54, %v56
      %v58 = vsub.f32 %v35, %v39
      %v59 = vmul.f32 %v58, %v45
      %v60 = vand.u32 2147483647, %v59
      %v61 = vsub.f32 0.0, %v60
      %v62 = vmul.f32 %v61, 1.442695
      %v63 = vpow.pop %v62
      %v64 = vadd.f32 %v63, 1.0
      %v65 = vrcp.pop %v64
      %v66 = vmul.f32 1.0, %v65
      %vm67 = vcmp.ge.f32.partialorder %v59, 0.0
      %v68 = vmul.f32 %v63, %v66
      %v69 = vsel %vm67, %v66, %v68
      %v70 = vsub.f32 %v57, %v69
      %v71 = vadd.f32 %v70, 1e-10
      %v72 = vld [vmem:[%s0] sm:$0xf]
      %vm73 = vcmask 3072
      %v74 = vsel %vm73, %v72, -inf
      %v75 = vrot.slane %v74, 4
      %v76 = vmax.f32 %v74, %v75
      %v77 = vrot.slane %v76, 2
      %v78 = vmax.f32 %v76, %v77
      %v79 = vrot.slane %v78, 1
      %v80 = vmax.f32 %v78, %v79
      %v81 = vsub.f32 %v72, %v80
      %v82 = vmul.f32 %v81, 1.442695
      %v83 = vpow.pop %v82
      %v84 = vsel %vm73, %v83, 0.0
      %v85 = vrot.slane %v84, 4
      %v86 = vadd.f32 %v84, %v85
      %v87 = vrot.slane %v86, 2
      %v88 = vadd.f32 %v86, %v87
      %v89 = vrot.slane %v88, 1
      %v90 = vadd.f32 %v88, %v89
      %v91 = vrcp.pop %v90
      %v92 = vmul.f32 %v83, %v91
      %94 = vset.pattern.permute.xlu0 0
      %95 = vperm.xlu0 %94, %v92
      %v96 = vpop.permute.xlu0 %95
      %v98 = vmul.f32 %v71, %v96
      %vm99 = vcmask 1043456
      %v100 = vsel %vm99, %v98, 0.0
      %v101 = vrot.slane %v100, 4
      %v102 = vadd.f32 %v100, %v101
      %v103 = vrot.slane %v102, 2
      %v104 = vadd.f32 %v102, %v103
      %v105 = vrot.slane %v104, 1
      %v106 = vadd.f32 %v104, %v105
      %v107 = vlog2.pop %v106
      %v108 = vmul.f32 %v107, 0.6931472
      %109 = vst [vmem:[#allocation2] sm:$0xff] %v108
    $region17: #{tpu_custom_call.1} parent=1 // pred_fallthru
      _
    %v110 = vld [vmem:[#allocation2] sm:$0x1]
    %v111 = vlaneseq
    %v112 = vshrl.u32 %v111, 7
    %v113 = vsub.s32 0, %v112
    %v114 = vrot.slane %v110, %v113
    %115 = vst [vmem:[#allocation3] sm:$0xff] %v114
    // Predicated region
    $region18: #{tpu_custom_call.1} parent=1 // pred_check
      _
    $region19: #{tpu_custom_call.1} parent=1 // pred_check_branch
      %117 = sbr.rel (0) target = $region21
    $region20: #{tpu_custom_call.1} parent=1 // pred_region
      %s119 = ssub.s32 128, 128
      %120 = vsyncadd [#allocation4], %s119
      %s122 = sshll.u32 [#allocation3], 4
      %s123 = int_to_ptr.vmem [resolvable:$true] %s122
      %125 = dma.vmem_to_hbm [thread:$0]  %s123, 128, %s3, [#allocation4]
    $region21: #{tpu_custom_call.1} parent=1 // pred_fallthru
      _
    // Predicated region
    $region22: #{tpu_custom_call.1} parent=1 // pred_check
      _
    $region23: #{tpu_custom_call.1} parent=1 // pred_check_branch
      %127 = sbr.rel (0) target = $region25
    $region24: #{tpu_custom_call.1} parent=1 // pred_region
      %128 = dma.done [#allocation4], 128
    $region25: #{tpu_custom_call.1} parent=1 // pred_fallthru
      _
    %129 = vsyncpa [#allocation4], 1

</llo_original>
